<compile_context>
chip_gen: v7x
topology: tpu7x:2x2x1
jax: 0.10.0
libtpu: 0.0.40
codegen_flags: <defaults>
</compile_context>

<pallas_src>
import jax
import jax.numpy as jnp
from jax.experimental import pallas as pl
from jax.experimental.pallas import tpu as pltpu


def _qgen_kernel(patches_ref, wc_ref, c_scale_ref, c_shift_ref,
                 ws_ref, kT_ref, bias_ref, base_ref, base_full_ref,
                 wo_ref, o_scale_ref, o_shift_ref, out_ref):
    B, HW, CIN9 = patches_ref.shape
    M, Cq = base_ref.shape
    Ctot = base_full_ref.shape[1]
    f32 = jnp.float32

    # ---- q_g: 3x3 conv as one batch-stacked im2col matmul + folded BN2d + ReLU ----
    p2 = patches_ref[...].reshape(B * HW, CIN9)
    feat = jnp.dot(p2, wc_ref[...], preferred_element_type=f32)
    feat = jnp.maximum(feat * c_scale_ref[...] + c_shift_ref[...], 0.0)      # (B*HW, Cq) f32

    # ---- fused spacial_fc + k_g logits (k_g itself was hoisted to the wrapper) ----
    #   A[b,h,m]      = sum_c feat[b,h,c] * k[m,c]         (single stacked 2D matmul)
    #   logits[b,m,n] = sum_h ws[n,h] * A[b,h,m] + bs[n] * sum_c k[m,c]
    A = jnp.dot(feat, kT_ref[...], preferred_element_type=f32)               # (B*HW, M)
    A3 = A.reshape(B, HW, M)
    ws_b = jnp.broadcast_to(ws_ref[...][None], (B, M, HW))   # only remaining broadcast
    wT = jnp.einsum('bnh,bhm->bnm', ws_b, A3, preferred_element_type=f32)    # (B, N, M)
    logits = jnp.swapaxes(wT, 1, 2) + bias_ref[...][None]                    # (B, M, N)

    # ---- softmax over n (f32; EUP approx reciprocal) ----
    logits = logits - jnp.max(logits, axis=-1, keepdims=True)
    e = jnp.exp(logits)
    w = e * pl.reciprocal(jnp.sum(e, axis=-1, keepdims=True), approx=True)

    # ---- query = softmax @ base as a single stacked 2D matmul (base batch-invariant) ----
    q2 = jnp.dot(w.reshape(B * M, M), base_ref[...], preferred_element_type=f32)   # (B*M, Cq)

    # ---- out_g (weights zero-extended over cat lanes) + residual + cat, one store ----
    o = jnp.dot(q2.astype(wo_ref.dtype), wo_ref[...], preferred_element_type=f32)  # (B*M, Ctot)
    o = jnp.maximum(o * o_scale_ref[...] + o_shift_ref[...], 0.0)
    out_ref[...] = (o.reshape(B, M, Ctot) + base_full_ref[...][None]).astype(out_ref.dtype)


def query_generation_spacial(x, prm, *, mxu_dtype=jnp.bfloat16, b_tile=None):
    b, cin, H, W = x.shape
    M, Cq = prm['base'].shape
    Ccat = prm['cat'].shape[1]
    Ctot = Cq + Ccat
    HW = H * W
    assert HW == 64, "spacial_fc is Linear(64, query_num): H*W must be 64"
    cin9 = cin * 9
    f32 = jnp.float32

    if b_tile is None:
        # Large tiles amortize the ~0.35us per-step overhead; >=2 steps whenever
        # possible so v7x's two TensorCores both get work; cap keeps the per-step
        # VMEM footprint well inside v7x's 64 MiB.
        b_tile = min(256, max(1, -(-b // 2)))
    n_steps = -(-b // b_tile)
    b_pad = n_steps * b_tile

    # ---- im2col (3x3, pad=1), built channels-last directly, cast to MXU dtype early ----
    x_nhwc = jnp.transpose(x, (0, 2, 3, 1)).astype(mxu_dtype)          # (b, H, W, cin)
    xp = jnp.pad(x_nhwc, ((0, 0), (1, 1), (1, 1), (0, 0)))
    cols = [xp[:, dy:dy + H, dx:dx + W, :] for dy in range(3) for dx in range(3)]
    patches = jnp.stack(cols, axis=3).reshape(b, HW, cin9)             # (b, HW, 9*cin)
    if b_pad != b:
        patches = jnp.pad(patches, ((0, b_pad - b), (0, 0), (0, 0)))

    row = lambda v: v.reshape(1, -1).astype(f32)
    # conv weight -> (ky, kx, cin, Cq) -> (9*cin, Cq) to match the patch layout
    wc = prm['conv_w'].transpose(2, 3, 1, 0).reshape(cin9, Cq).astype(mxu_dtype)

    # ---- k_g is batch-invariant: hoist out of the kernel ----
    k = jnp.maximum((prm['base'] @ prm['wk'].T) * prm['k_scale'] + prm['k_shift'], 0.0)
    kT = k.T.astype(f32)                                                       # (Cq, M)
    logit_bias = (jnp.sum(k, axis=1)[:, None] * prm['bs'][None, :]).astype(f32)  # (M, M)

    # ---- out_g weights zero/identity-extended over the cat lanes; residual uses
    #      concat(base, cat) so the kernel writes the full (Cq+Ccat)-wide output ----
    woT = prm['wo'].T.astype(f32)
    if Ccat:
        wo_ext = jnp.concatenate([woT, jnp.zeros((Cq, Ccat), f32)], axis=1)
        o_scale = jnp.concatenate([prm['o_scale'].astype(f32), jnp.ones((Ccat,), f32)])
        o_shift = jnp.concatenate([prm['o_shift'].astype(f32), jnp.zeros((Ccat,), f32)])
        base_full = jnp.concatenate([prm['base'], prm['cat']], axis=1)
    else:
        wo_ext, o_scale, o_shift, base_full = woT, prm['o_scale'], prm['o_shift'], prm['base']

    inputs = (patches, wc, row(prm['c_scale']), row(prm['c_shift']),
              prm['ws'].astype(f32), kT, logit_bias,
              prm['base'].astype(f32), base_full.astype(f32),
              wo_ext.astype(mxu_dtype), row(o_scale), row(o_shift))

    def full(shape):
        n = len(shape)
        return pl.BlockSpec(shape, lambda i, n=n: (0,) * n)

    in_specs = [
        pl.BlockSpec((b_tile, HW, cin9), lambda i: (i, 0, 0)),
        full((cin9, Cq)), full((1, Cq)), full((1, Cq)),
        full((M, HW)), full((Cq, M)), full((M, M)),
        full((M, Cq)), full((M, Ctot)),
        full((Cq, Ctot)), full((1, Ctot)), full((1, Ctot)),
    ]
    out_spec = pl.BlockSpec((b_tile, M, Ctot), lambda i: (i, 0, 0))

    # ---- advisory cost estimate + explicit scoped-VMEM budget ----
    flops = 2 * b_pad * (HW * cin9 * Cq + HW * Cq * M + HW * M * M
                         + M * M * Cq + M * Cq * Ctot)
    bytes_in = sum(int(a.size) * a.dtype.itemsize for a in inputs)
    bytes_out = b_pad * M * Ctot * 4
    cost = pl.CostEstimate(flops=int(flops), transcendentals=int(b_pad * M * M),
                           bytes_accessed=int(bytes_in + bytes_out))

    esz = jnp.dtype(mxu_dtype).itemsize
    step_bytes = (2 * b_tile * HW * cin9 * esz              # double-buffered patches
                  + 2 * b_tile * M * Ctot * 4               # double-buffered output
                  + b_tile * HW * (Cq + 2 * M) * 4          # feat / A / ws broadcast
                  + b_tile * HW * Cq * esz                  # bf16 intermediates
                  + b_tile * M * (4 * M + Cq + 2 * Ctot) * 4
                  + (2 << 20))
    vmem_limit = int(min(max(2 * step_bytes, 16 << 20), 48 << 20))

    out = pl.pallas_call(
        _qgen_kernel,
        out_shape=jax.ShapeDtypeStruct((b_pad, M, Ctot), f32),
        grid_spec=pltpu.PrefetchScalarGridSpec(
            num_scalar_prefetch=0, grid=(n_steps,),
            in_specs=in_specs, out_specs=out_spec),
        compiler_params=pltpu.CompilerParams(
            dimension_semantics=("parallel",),
            vmem_limit_bytes=vmem_limit),
        cost_estimate=cost,
    )(*inputs)
    return out[:b]


# ---------------- deterministic parameter init (eval-mode BN folded) ----------------
def _fold_bn(gamma, beta, mean, var, bias, eps=1e-5):
    scale = gamma / jnp.sqrt(var + eps)
    shift = bias * scale + beta - mean * scale
    return scale.astype(jnp.float32), shift.astype(jnp.float32)


def init_params(key, in_channel, query_num, query_base, query_channel):
    Ccat = int(query_channel * query_base)
    Cq = query_channel - Ccat
    ks = jax.random.split(key, 22)
    nrm = lambda k, shape, s=0.2: (s * jax.random.normal(k, shape)).astype(jnp.float32)
    uni = lambda k, shape: jax.random.uniform(k, shape, jnp.float32, 0.5, 1.5)

    base = nrm(ks[0], (query_num, Cq), 1.0)          # base_features.weight
    cat = nrm(ks[1], (query_num, Ccat), 1.0)         # base_fea_cat.weight

    conv_w = nrm(ks[2], (Cq, in_channel, 3, 3))
    conv_b = nrm(ks[3], (Cq,))
    c_scale, c_shift = _fold_bn(uni(ks[4], (Cq,)), nrm(ks[5], (Cq,)),
                                nrm(ks[6], (Cq,)), uni(ks[7], (Cq,)), conv_b)

    ws = nrm(ks[8], (query_num, 64))                 # spacial_fc.weight  (M, 64)
    bs = nrm(ks[9], (query_num,))                    # spacial_fc.bias

    wk = nrm(ks[10], (Cq, Cq))
    bk = nrm(ks[11], (Cq,))
    k_scale, k_shift = _fold_bn(uni(ks[12], (Cq,)), nrm(ks[13], (Cq,)),
                                nrm(ks[14], (Cq,)), uni(ks[15], (Cq,)), bk)

    wo = nrm(ks[16], (Cq, Cq))
    bo = nrm(ks[17], (Cq,))
    o_scale, o_shift = _fold_bn(uni(ks[18], (Cq,)), nrm(ks[19], (Cq,)),
                                nrm(ks[20], (Cq,)), uni(ks[21], (Cq,)), bo)

    return dict(base=base, cat=cat, conv_w=conv_w, c_scale=c_scale, c_shift=c_shift,
                ws=ws, bs=bs, wk=wk, k_scale=k_scale, k_shift=k_shift,
                wo=wo, o_scale=o_scale, o_shift=o_shift)


# ---------------- pure-JAX reference (same semantics, for validation) ----------------
def reference(x, prm):
    b = x.shape[0]
    M, Cq = prm['base'].shape
    y = jax.lax.conv_general_dilated(
        x, prm['conv_w'], window_strides=(1, 1), padding=((1, 1), (1, 1)),
        dimension_numbers=('NCHW', 'OIHW', 'NCHW'))
    y = jnp.maximum(y * prm['c_scale'][None, :, None, None]
                    + prm['c_shift'][None, :, None, None], 0.0)
    xf = y.reshape(b, Cq, -1)                                          # (b, Cq, 64)
    xs = jnp.einsum('bcp,mp->bcm', xf, prm['ws']) + prm['bs']          # (b, Cq, M)
    k = jnp.maximum((prm['base'] @ prm['wk'].T) * prm['k_scale'] + prm['k_shift'], 0.0)
    w = jax.nn.softmax(jnp.einsum('bcn,mc->bmn', xs, k), axis=-1)
    q = jnp.einsum('bmn,nc->bmc', w, prm['base'])
    q = jnp.maximum(jnp.einsum('bmc,oc->bmo', q, prm['wo']) * prm['o_scale']
                    + prm['o_shift'], 0.0) + prm['base'][None]
    cat = jnp.broadcast_to(prm['cat'][None], (b,) + prm['cat'].shape)
    return jnp.concatenate([q, cat], axis=-1)


if __name__ == "__main__":
    in_channel, query_num, query_base, query_channel = 4, 8, 0.5, 64
    b, H, W = 2, 8, 8                                 # H*W must be 64 (spacial_fc)

    key = jax.random.PRNGKey(0)
    kx, kp = jax.random.split(key)
    prm = init_params(kp, in_channel, query_num, query_base, query_channel)
    x = jax.random.normal(kx, (b, in_channel, H, W), dtype=jnp.float32)

    ref = reference(x, prm)

    # f32 MXU path: tight check against the pure-JAX reference.
    out_f32 = jax.block_until_ready(
        query_generation_spacial(x, prm, mxu_dtype=jnp.float32))
    assert out_f32.shape == (b, query_num, query_channel), out_f32.shape
    assert jnp.allclose(out_f32, ref, atol=1e-2, rtol=1e-2), \
        float(jnp.max(jnp.abs(out_f32 - ref)))

    # bf16 MXU operands for the big matmuls (perf default, f32 accumulation).
    out_bf16 = jax.block_until_ready(query_generation_spacial(x, prm))
    assert out_bf16.shape == (b, query_num, query_channel), out_bf16.shape
    assert jnp.allclose(out_bf16, ref, atol=1e-1, rtol=1e-1), \
        float(jnp.max(jnp.abs(out_bf16 - ref)))

    print("KERNEL_OK")
</pallas_src>

<mosaic_0001>
module attributes {stable_mosaic.version = 11 : i64} {
  func.func @_qgen_kernel(%arg0: i32, %arg1: memref<1x64x36xf32, #tpu.memory_space<vmem>>, %arg2: memref<36x32xf32, #tpu.memory_space<vmem>>, %arg3: memref<1x32xf32, #tpu.memory_space<vmem>>, %arg4: memref<1x32xf32, #tpu.memory_space<vmem>>, %arg5: memref<8x64xf32, #tpu.memory_space<vmem>>, %arg6: memref<32x8xf32, #tpu.memory_space<vmem>>, %arg7: memref<8x8xf32, #tpu.memory_space<vmem>>, %arg8: memref<8x32xf32, #tpu.memory_space<vmem>>, %arg9: memref<8x64xf32, #tpu.memory_space<vmem>>, %arg10: memref<32x64xf32, #tpu.memory_space<vmem>>, %arg11: memref<1x64xf32, #tpu.memory_space<vmem>>, %arg12: memref<1x64xf32, #tpu.memory_space<vmem>>, %arg13: memref<1x8x64xf32, #tpu.memory_space<vmem>>) attributes {dimension_semantics = [#tpu.dimension_semantics<parallel>], iteration_bounds = array<i64: 2>, scalar_prefetch = 0 : i64, scratch_operands = 0 : i64, tpu.core_type = #tpu.core_type<tc>, window_params = [{transform_indices = @transform_0, window_bounds = array<i64: 1, 64, 36>}, {pipeline_mode = #tpu.pipeline_mode<synchronous>, transform_indices = @transform_1, window_bounds = array<i64: 36, 32>}, {pipeline_mode = #tpu.pipeline_mode<synchronous>, transform_indices = @transform_2, window_bounds = array<i64: 1, 32>}, {pipeline_mode = #tpu.pipeline_mode<synchronous>, transform_indices = @transform_3, window_bounds = array<i64: 1, 32>}, {pipeline_mode = #tpu.pipeline_mode<synchronous>, transform_indices = @transform_4, window_bounds = array<i64: 8, 64>}, {pipeline_mode = #tpu.pipeline_mode<synchronous>, transform_indices = @transform_5, window_bounds = array<i64: 32, 8>}, {pipeline_mode = #tpu.pipeline_mode<synchronous>, transform_indices = @transform_6, window_bounds = array<i64: 8, 8>}, {pipeline_mode = #tpu.pipeline_mode<synchronous>, transform_indices = @transform_7, window_bounds = array<i64: 8, 32>}, {pipeline_mode = #tpu.pipeline_mode<synchronous>, transform_indices = @transform_8, window_bounds = array<i64: 8, 64>}, {pipeline_mode = #tpu.pipeline_mode<synchronous>, transform_indices = @transform_9, window_bounds = array<i64: 32, 64>}, {pipeline_mode = #tpu.pipeline_mode<synchronous>, transform_indices = @transform_10, window_bounds = array<i64: 1, 64>}, {pipeline_mode = #tpu.pipeline_mode<synchronous>, transform_indices = @transform_11, window_bounds = array<i64: 1, 64>}, {transform_indices = @transform_12, window_bounds = array<i64: 1, 8, 64>}]} {
    %c0 = arith.constant 0 : index
    %c0_0 = arith.constant 0 : index
    %c0_1 = arith.constant 0 : index
    %0 = vector.load %arg1[%c0, %c0_0, %c0_1] : memref<1x64x36xf32, #tpu.memory_space<vmem>>, vector<1x64x36xf32>
    %1 = vector.shape_cast %0 : vector<1x64x36xf32> to vector<64x36xf32>
    %c0_2 = arith.constant 0 : index
    %c0_3 = arith.constant 0 : index
    %2 = vector.load %arg2[%c0_2, %c0_3] : memref<36x32xf32, #tpu.memory_space<vmem>>, vector<36x32xf32>
    %cst = arith.constant dense<0.000000e+00> : vector<64x32xf32>
    %3 = tpu.matmul %1, %2, %cst {dimension_numbers = #tpu.dot_dimension_numbers<[1], [0], [0], [1], [0, 0, 1, 1], [], []>} : vector<64x36xf32>, vector<36x32xf32>, vector<64x32xf32> -> vector<64x32xf32>
    %c0_4 = arith.constant 0 : index
    %c0_5 = arith.constant 0 : index
    %4 = vector.load %arg3[%c0_4, %c0_5] : memref<1x32xf32, #tpu.memory_space<vmem>>, vector<1x32xf32>
    %5 = vector.broadcast %4 : vector<1x32xf32> to vector<64x32xf32>
    %6 = arith.mulf %3, %5 : vector<64x32xf32>
    %c0_6 = arith.constant 0 : index
    %c0_7 = arith.constant 0 : index
    %7 = vector.load %arg4[%c0_6, %c0_7] : memref<1x32xf32, #tpu.memory_space<vmem>>, vector<1x32xf32>
    %8 = vector.broadcast %7 : vector<1x32xf32> to vector<64x32xf32>
    %9 = arith.addf %6, %8 : vector<64x32xf32>
    %cst_8 = arith.constant 0.000000e+00 : f32
    %10 = vector.broadcast %cst_8 : f32 to vector<64x32xf32>
    %11 = arith.maximumf %9, %10 : vector<64x32xf32>
    %c0_9 = arith.constant 0 : index
    %c0_10 = arith.constant 0 : index
    %12 = vector.load %arg6[%c0_9, %c0_10] : memref<32x8xf32, #tpu.memory_space<vmem>>, vector<32x8xf32>
    %cst_11 = arith.constant dense<0.000000e+00> : vector<64x8xf32>
    %13 = tpu.matmul %11, %12, %cst_11 {dimension_numbers = #tpu.dot_dimension_numbers<[1], [0], [0], [1], [0, 0, 1, 1], [], []>} : vector<64x32xf32>, vector<32x8xf32>, vector<64x8xf32> -> vector<64x8xf32>
    %14 = vector.shape_cast %13 : vector<64x8xf32> to vector<1x64x8xf32>
    %c0_12 = arith.constant 0 : index
    %c0_13 = arith.constant 0 : index
    %15 = vector.load %arg5[%c0_12, %c0_13] : memref<8x64xf32, #tpu.memory_space<vmem>>, vector<8x64xf32>
    %16 = vector.shape_cast %15 : vector<8x64xf32> to vector<1x8x64xf32>
    "tpu.trace_start"() <{level = 10 : i32, message = "bnh,bhm->bnm"}> : () -> ()
    %cst_14 = arith.constant dense<0.000000e+00> : vector<1x8x8xf32>
    %17 = tpu.matmul %16, %14, %cst_14 {dimension_numbers = #tpu.dot_dimension_numbers<[2], [1], [1], [2], [0, 0, 0, 1, 1, 2], [0], [0]>} : vector<1x8x64xf32>, vector<1x64x8xf32>, vector<1x8x8xf32> -> vector<1x8x8xf32>
    "tpu.trace_stop"() : () -> ()
    %18 = tpu.transpose %17, [0, 2, 1] : vector<1x8x8xf32> -> vector<1x8x8xf32>
    %c0_15 = arith.constant 0 : index
    %c0_16 = arith.constant 0 : index
    %19 = vector.load %arg7[%c0_15, %c0_16] : memref<8x8xf32, #tpu.memory_space<vmem>>, vector<8x8xf32>
    %20 = vector.shape_cast %19 : vector<8x8xf32> to vector<1x8x8xf32>
    %21 = arith.addf %18, %20 : vector<1x8x8xf32>
    %cst_17 = arith.constant dense<0xFF800000> : vector<1x8xf32>
    %22 = vector.multi_reduction <maximumf>, %21, %cst_17 [2] : vector<1x8x8xf32> to vector<1x8xf32>
    %23 = vector.shape_cast %22 : vector<1x8xf32> to vector<1x8x1xf32>
    %24 = vector.broadcast %23 : vector<1x8x1xf32> to vector<1x8x8xf32>
    %25 = arith.subf %21, %24 : vector<1x8x8xf32>
    %26 = math.exp %25 : vector<1x8x8xf32>
    %cst_18 = arith.constant dense<0.000000e+00> : vector<1x8xf32>
    %27 = vector.multi_reduction <add>, %26, %cst_18 [2] : vector<1x8x8xf32> to vector<1x8xf32>
    %28 = vector.shape_cast %27 : vector<1x8xf32> to vector<1x8x1xf32>
    %29 = tpu.reciprocal %28 {approx = true} : vector<1x8x1xf32> -> vector<1x8x1xf32>
    %30 = vector.broadcast %29 : vector<1x8x1xf32> to vector<1x8x8xf32>
    %31 = arith.mulf %26, %30 : vector<1x8x8xf32>
    %32 = vector.shape_cast %31 : vector<1x8x8xf32> to vector<8x8xf32>
    %c0_19 = arith.constant 0 : index
    %c0_20 = arith.constant 0 : index
    %33 = vector.load %arg8[%c0_19, %c0_20] : memref<8x32xf32, #tpu.memory_space<vmem>>, vector<8x32xf32>
    %cst_21 = arith.constant dense<0.000000e+00> : vector<8x32xf32>
    %34 = tpu.matmul %32, %33, %cst_21 {dimension_numbers = #tpu.dot_dimension_numbers<[1], [0], [0], [1], [0, 0, 1, 1], [], []>} : vector<8x8xf32>, vector<8x32xf32>, vector<8x32xf32> -> vector<8x32xf32>
    %c0_22 = arith.constant 0 : index
    %c0_23 = arith.constant 0 : index
    %35 = vector.load %arg10[%c0_22, %c0_23] : memref<32x64xf32, #tpu.memory_space<vmem>>, vector<32x64xf32>
    %cst_24 = arith.constant dense<0.000000e+00> : vector<8x64xf32>
    %36 = tpu.matmul %34, %35, %cst_24 {dimension_numbers = #tpu.dot_dimension_numbers<[1], [0], [0], [1], [0, 0, 1, 1], [], []>} : vector<8x32xf32>, vector<32x64xf32>, vector<8x64xf32> -> vector<8x64xf32>
    %c0_25 = arith.constant 0 : index
    %c0_26 = arith.constant 0 : index
    %37 = vector.load %arg11[%c0_25, %c0_26] : memref<1x64xf32, #tpu.memory_space<vmem>>, vector<1x64xf32>
    %38 = vector.broadcast %37 : vector<1x64xf32> to vector<8x64xf32>
    %39 = arith.mulf %36, %38 : vector<8x64xf32>
    %c0_27 = arith.constant 0 : index
    %c0_28 = arith.constant 0 : index
    %40 = vector.load %arg12[%c0_27, %c0_28] : memref<1x64xf32, #tpu.memory_space<vmem>>, vector<1x64xf32>
    %41 = vector.broadcast %40 : vector<1x64xf32> to vector<8x64xf32>
    %42 = arith.addf %39, %41 : vector<8x64xf32>
    %cst_29 = arith.constant 0.000000e+00 : f32
    %43 = vector.broadcast %cst_29 : f32 to vector<8x64xf32>
    %44 = arith.maximumf %42, %43 : vector<8x64xf32>
    %45 = vector.shape_cast %44 : vector<8x64xf32> to vector<1x8x64xf32>
    %c0_30 = arith.constant 0 : index
    %c0_31 = arith.constant 0 : index
    %46 = vector.load %arg9[%c0_30, %c0_31] : memref<8x64xf32, #tpu.memory_space<vmem>>, vector<8x64xf32>
    %47 = vector.shape_cast %46 : vector<8x64xf32> to vector<1x8x64xf32>
    %48 = arith.addf %45, %47 : vector<1x8x64xf32>
    %c0_32 = arith.constant 0 : index
    %c0_33 = arith.constant 0 : index
    %c0_34 = arith.constant 0 : index
    %49 = vector.load %arg13[%c0_32, %c0_33, %c0_34] : memref<1x8x64xf32, #tpu.memory_space<vmem>>, vector<1x8x64xf32>
    tpu.vector_store %arg13[%c0_32, %c0_33, %c0_34], %48 {strides = array<i32>} : memref<1x8x64xf32, #tpu.memory_space<vmem>>, vector<1x8x64xf32>,
    return
  }
  func.func @transform_0(%arg0: i32) -> (i32, i32, i32) {
    %c0_i32 = arith.constant 0 : i32
    %c0_i32_0 = arith.constant 0 : i32
    %c0_i32_1 = arith.constant 0 : i32
    return %arg0, %c0_i32, %c0_i32_0 : i32, i32, i32
  }
  func.func @transform_1(%arg0: i32) -> (i32, i32) {
    %c0_i32 = arith.constant 0 : i32
    %c0_i32_0 = arith.constant 0 : i32
    %c0_i32_1 = arith.constant 0 : i32
    return %c0_i32, %c0_i32_0 : i32, i32
  }
  func.func @transform_2(%arg0: i32) -> (i32, i32) {
    %c0_i32 = arith.constant 0 : i32
    %c0_i32_0 = arith.constant 0 : i32
    %c0_i32_1 = arith.constant 0 : i32
    return %c0_i32, %c0_i32_0 : i32, i32
  }
  func.func @transform_3(%arg0: i32) -> (i32, i32) {
    %c0_i32 = arith.constant 0 : i32
    %c0_i32_0 = arith.constant 0 : i32
    %c0_i32_1 = arith.constant 0 : i32
    return %c0_i32, %c0_i32_0 : i32, i32
  }
  func.func @transform_4(%arg0: i32) -> (i32, i32) {
    %c0_i32 = arith.constant 0 : i32
    %c0_i32_0 = arith.constant 0 : i32
    %c0_i32_1 = arith.constant 0 : i32
    return %c0_i32, %c0_i32_0 : i32, i32
  }
  func.func @transform_5(%arg0: i32) -> (i32, i32) {
    %c0_i32 = arith.constant 0 : i32
    %c0_i32_0 = arith.constant 0 : i32
    %c0_i32_1 = arith.constant 0 : i32
    return %c0_i32, %c0_i32_0 : i32, i32
  }
  func.func @transform_6(%arg0: i32) -> (i32, i32) {
    %c0_i32 = arith.constant 0 : i32
    %c0_i32_0 = arith.constant 0 : i32
    %c0_i32_1 = arith.constant 0 : i32
    return %c0_i32, %c0_i32_0 : i32, i32
  }
  func.func @transform_7(%arg0: i32) -> (i32, i32) {
    %c0_i32 = arith.constant 0 : i32
    %c0_i32_0 = arith.constant 0 : i32
    %c0_i32_1 = arith.constant 0 : i32
    return %c0_i32, %c0_i32_0 : i32, i32
  }
  func.func @transform_8(%arg0: i32) -> (i32, i32) {
    %c0_i32 = arith.constant 0 : i32
    %c0_i32_0 = arith.constant 0 : i32
    %c0_i32_1 = arith.constant 0 : i32
    return %c0_i32, %c0_i32_0 : i32, i32
  }
  func.func @transform_9(%arg0: i32) -> (i32, i32) {
    %c0_i32 = arith.constant 0 : i32
    %c0_i32_0 = arith.constant 0 : i32
    %c0_i32_1 = arith.constant 0 : i32
    return %c0_i32, %c0_i32_0 : i32, i32
  }
  func.func @transform_10(%arg0: i32) -> (i32, i32) {
    %c0_i32 = arith.constant 0 : i32
    %c0_i32_0 = arith.constant 0 : i32
    %c0_i32_1 = arith.constant 0 : i32
    return %c0_i32, %c0_i32_0 : i32, i32
  }
  func.func @transform_11(%arg0: i32) -> (i32, i32) {
    %c0_i32 = arith.constant 0 : i32
    %c0_i32_0 = arith.constant 0 : i32
    %c0_i32_1 = arith.constant 0 : i32
    return %c0_i32, %c0_i32_0 : i32, i32
  }
  func.func @transform_12(%arg0: i32) -> (i32, i32, i32) {
    %c0_i32 = arith.constant 0 : i32
    %c0_i32_0 = arith.constant 0 : i32
    %c0_i32_1 = arith.constant 0 : i32
    return %arg0, %c0_i32, %c0_i32_0 : i32, i32, i32
  }
}

</mosaic_0001>

<llo_original>
// kernel: tpu_custom_call.1
$region0: #{tpu_custom_call.1}
  #allocation0 [shape = 'u32[]', space=smem, size = 0x4, offset = 0x4, fixed_abs, tag = 'smem constant byte address 0x4 - core index']
  #allocation1 [shape = 'u32[144,128]{1,0:T(1,128)}', space=vmem, size = 0x12000, scoped, tag = 'internal scratch']
  %s0 = inlined_call_operand.vmem [shape: f32[2,64,36], index: 0, kind: input, shape index: {}]
  %s1 = inlined_call_operand.vmem [shape: f32[36,32], index: 1, kind: input, shape index: {}]
  %s2 = inlined_call_operand.vmem [shape: f32[1,32], index: 2, kind: input, shape index: {}]
  %s3 = inlined_call_operand.vmem [shape: f32[1,32], index: 3, kind: input, shape index: {}]
  %s4 = inlined_call_operand.vmem [shape: f32[8,64], index: 4, kind: input, shape index: {}]
  %s5 = inlined_call_operand.vmem [shape: f32[32,8], index: 5, kind: input, shape index: {}]
  %s6 = inlined_call_operand.vmem [shape: f32[8,8], index: 6, kind: input, shape index: {}]
  %s7 = inlined_call_operand.vmem [shape: f32[8,32], index: 7, kind: input, shape index: {}]
  %s8 = inlined_call_operand.vmem [shape: f32[8,64], index: 8, kind: input, shape index: {}]
  %s9 = inlined_call_operand.vmem [shape: f32[32,64], index: 9, kind: input, shape index: {}]
  %s10 = inlined_call_operand.vmem [shape: f32[1,64], index: 10, kind: input, shape index: {}]
  %s11 = inlined_call_operand.vmem [shape: f32[1,64], index: 11, kind: input, shape index: {}]
  %s12 = inlined_call_operand.hbm [shape: f32[2,8,64], index: 12, kind: output, shape index: {}]
  %s13 = sld [smem:[#allocation0]]
  $region81: #{tpu_custom_call.1} parent=0
    _
  %s15 = ssub.s32 1, %s13
  %s16 = scalar_select 0, %s15, %s13
  $region1: #{tpu_custom_call.1} parent=0
    #allocation2 [shape = 'u8[8192]{0}', space=vmem, size = 0x2000, scoped, tag = 'output window, operand 0']
    #allocation3 [shape = 's32[2]{0}', space=sflag, size = 0x8, scoped, tag = 'scoped memory for tpu_custom_call.1']
    %17 = vsyncpa [#allocation3], 0
    %s18 = scalar_lea.sflag [#allocation3], 1
    %19 = vsyncpa %s18, 0
    loop: start=0, step=1, limit=4
    $region2: #{tpu_custom_call.1} parent=1 // loop_pre_header
      _
    $region3: #{tpu_custom_call.1} parent=1 // loop_header
      %s21 = sphi 0, %s25
      %p22 = scmp.ge.s32.totalorder %s21, 4
      %s31 = sphi 0, %s33
      %s34 = sphi 0, %s31
      %s35 = sphi 0, %s34
      %s51 = sphi 0, %s35
      %s55 = sphi 0, %s55
      %s57 = sphi 0, %s55
      %s58 = sphi 0, %s57
      %s72 = sphi 0, %s58
      %s76 = sphi 0, %s76
      %s78 = sphi 0, %s76
      %s79 = sphi 0, %s78
      %s93 = sphi 0, %s79
      %s97 = sphi 0, %s97
      %s99 = sphi 0, %s97
      %s100 = sphi 0, %s99
      %s114 = sphi 0, %s100
      %s118 = sphi 0, %s118
      %s120 = sphi 0, %s118
      %s121 = sphi 0, %s120
      %s135 = sphi 0, %s121
      %s139 = sphi 0, %s139
      %s141 = sphi 0, %s139
      %s142 = sphi 0, %s141
      %s156 = sphi 0, %s142
      %s160 = sphi 0, %s160
      %s162 = sphi 0, %s160
      %s163 = sphi 0, %s162
      %s177 = sphi 0, %s163
      %s181 = sphi 0, %s181
      %s183 = sphi 0, %s181
      %s184 = sphi 0, %s183
      %s198 = sphi 0, %s184
      %s202 = sphi 0, %s202
      %s204 = sphi 0, %s202
      %s205 = sphi 0, %s204
      %s219 = sphi 0, %s205
      %s223 = sphi 0, %s223
      %s225 = sphi 0, %s223
      %s226 = sphi 0, %s225
      %s240 = sphi 0, %s226
      %s244 = sphi 0, %s244
      %s246 = sphi 0, %s244
      %s247 = sphi 0, %s246
      %s261 = sphi 0, %s247
      %s265 = sphi 0, %s265
      %s267 = sphi 0, %s265
      %s268 = sphi 0, %s267
      %s282 = sphi 0, %s268
      %s288 = sphi 0, %s290
      %s291 = sphi 0, %s288
      %s292 = sphi 0, %s291
      %s308 = sphi 0, %s292
    $region4: #{tpu_custom_call.1} parent=1 // loop_header_branch
      %24 = sbr.rel (%p22) target = $region8
    $region5: #{tpu_custom_call.1} parent=1 // loop_body
      %s26 = ssub.s32 %s21, 1
      %s27 = ssub.s32 %s21, 2
      %s28 = sadd.s32 %s21, 1
      %s29 = ssub.s32 %s21, %s28
      %p30 = scmp.eq.s32.totalorder %s29, 0
      %s32 = sadd.s32 %s31, 1
      %s33 = scalar_select %p30, %s31, %s32
      %p36 = pneg %p30
      %p37 = scmp.eq.s32.totalorder %s21, 1
      %p38 = por %p36, %p37
      %p39 = scmp.ne.s32.totalorder %s31, %s34
      %p40 = scmp.eq.s32.totalorder %s21, 0
      %p41 = por %p39, %p40
      %p42 = scmp.ne.s32.totalorder %s31, %s34
      %p43 = scmp.eq.s32.totalorder %s26, 1
      %p44 = por %p42, %p43
      %p45 = scmp.ne.s32.totalorder %s34, %s35
      %p46 = scmp.eq.s32.totalorder %s26, 0
      %p47 = por %p45, %p46
      %p48 = scmp.ne.s32.totalorder %s34, %s35
      %p49 = scmp.eq.s32.totalorder %s27, 1
      %p50 = por %p48, %p49
      %p52 = scmp.ne.s32.totalorder %s35, %s51
      %p53 = scmp.eq.s32.totalorder %s27, 0
      %p54 = por %p52, %p53
      %s56 = sadd.s32 %s55, 1
      %p59 = scmp.eq.s32.totalorder %s21, 1
      %p60 = scmp.ne.s32.totalorder %s55, %s57
      %p61 = scmp.eq.s32.totalorder %s21, 0
      %p62 = por %p60, %p61
      %p63 = scmp.ne.s32.totalorder %s55, %s57
      %p64 = scmp.eq.s32.totalorder %s26, 1
      %p65 = por %p63, %p64
      %p66 = scmp.ne.s32.totalorder %s57, %s58
      %p67 = scmp.eq.s32.totalorder %s26, 0
      %p68 = por %p66, %p67
      %p69 = scmp.ne.s32.totalorder %s57, %s58
      %p70 = scmp.eq.s32.totalorder %s27, 1
      %p71 = por %p69, %p70
      %p73 = scmp.ne.s32.totalorder %s58, %s72
      %p74 = scmp.eq.s32.totalorder %s27, 0
      %p75 = por %p73, %p74
      %s77 = sadd.s32 %s76, 1
      %p80 = scmp.eq.s32.totalorder %s21, 1
      %p81 = scmp.ne.s32.totalorder %s76, %s78
      %p82 = scmp.eq.s32.totalorder %s21, 0
      %p83 = por %p81, %p82
      %p84 = scmp.ne.s32.totalorder %s76, %s78
      %p85 = scmp.eq.s32.totalorder %s26, 1
      %p86 = por %p84, %p85
      %p87 = scmp.ne.s32.totalorder %s78, %s79
      %p88 = scmp.eq.s32.totalorder %s26, 0
      %p89 = por %p87, %p88
      %p90 = scmp.ne.s32.totalorder %s78, %s79
      %p91 = scmp.eq.s32.totalorder %s27, 1
      %p92 = por %p90, %p91
      %p94 = scmp.ne.s32.totalorder %s79, %s93
      %p95 = scmp.eq.s32.totalorder %s27, 0
      %p96 = por %p94, %p95
      %s98 = sadd.s32 %s97, 1
      %p101 = scmp.eq.s32.totalorder %s21, 1
      %p102 = scmp.ne.s32.totalorder %s97, %s99
      %p103 = scmp.eq.s32.totalorder %s21, 0
      %p104 = por %p102, %p103
      %p105 = scmp.ne.s32.totalorder %s97, %s99
      %p106 = scmp.eq.s32.totalorder %s26, 1
      %p107 = por %p105, %p106
      %p108 = scmp.ne.s32.totalorder %s99, %s100
      %p109 = scmp.eq.s32.totalorder %s26, 0
      %p110 = por %p108, %p109
      %p111 = scmp.ne.s32.totalorder %s99, %s100
      %p112 = scmp.eq.s32.totalorder %s27, 1
      %p113 = por %p111, %p112
      %p115 = scmp.ne.s32.totalorder %s100, %s114
      %p116 = scmp.eq.s32.totalorder %s27, 0
      %p117 = por %p115, %p116
      %s119 = sadd.s32 %s118, 1
      %p122 = scmp.eq.s32.totalorder %s21, 1
      %p123 = scmp.ne.s32.totalorder %s118, %s120
      %p124 = scmp.eq.s32.totalorder %s21, 0
      %p125 = por %p123, %p124
      %p126 = scmp.ne.s32.totalorder %s118, %s120
      %p127 = scmp.eq.s32.totalorder %s26, 1
      %p128 = por %p126, %p127
      %p129 = scmp.ne.s32.totalorder %s120, %s121
      %p130 = scmp.eq.s32.totalorder %s26, 0
      %p131 = por %p129, %p130
      %p132 = scmp.ne.s32.totalorder %s120, %s121
      %p133 = scmp.eq.s32.totalorder %s27, 1
      %p134 = por %p132, %p133
      %p136 = scmp.ne.s32.totalorder %s121, %s135
      %p137 = scmp.eq.s32.totalorder %s27, 0
      %p138 = por %p136, %p137
      %s140 = sadd.s32 %s139, 1
      %p143 = scmp.eq.s32.totalorder %s21, 1
      %p144 = scmp.ne.s32.totalorder %s139, %s141
      %p145 = scmp.eq.s32.totalorder %s21, 0
      %p146 = por %p144, %p145
      %p147 = scmp.ne.s32.totalorder %s139, %s141
      %p148 = scmp.eq.s32.totalorder %s26, 1
      %p149 = por %p147, %p148
      %p150 = scmp.ne.s32.totalorder %s141, %s142
      %p151 = scmp.eq.s32.totalorder %s26, 0
      %p152 = por %p150, %p151
      %p153 = scmp.ne.s32.totalorder %s141, %s142
      %p154 = scmp.eq.s32.totalorder %s27, 1
      %p155 = por %p153, %p154
      %p157 = scmp.ne.s32.totalorder %s142, %s156
      %p158 = scmp.eq.s32.totalorder %s27, 0
      %p159 = por %p157, %p158
      %s161 = sadd.s32 %s160, 1
      %p164 = scmp.eq.s32.totalorder %s21, 1
      %p165 = scmp.ne.s32.totalorder %s160, %s162
      %p166 = scmp.eq.s32.totalorder %s21, 0
      %p167 = por %p165, %p166
      %p168 = scmp.ne.s32.totalorder %s160, %s162
      %p169 = scmp.eq.s32.totalorder %s26, 1
      %p170 = por %p168, %p169
      %p171 = scmp.ne.s32.totalorder %s162, %s163
      %p172 = scmp.eq.s32.totalorder %s26, 0
      %p173 = por %p171, %p172
      %p174 = scmp.ne.s32.totalorder %s162, %s163
      %p175 = scmp.eq.s32.totalorder %s27, 1
      %p176 = por %p174, %p175
      %p178 = scmp.ne.s32.totalorder %s163, %s177
      %p179 = scmp.eq.s32.totalorder %s27, 0
      %p180 = por %p178, %p179
      %s182 = sadd.s32 %s181, 1
      %p185 = scmp.eq.s32.totalorder %s21, 1
      %p186 = scmp.ne.s32.totalorder %s181, %s183
      %p187 = scmp.eq.s32.totalorder %s21, 0
      %p188 = por %p186, %p187
      %p189 = scmp.ne.s32.totalorder %s181, %s183
      %p190 = scmp.eq.s32.totalorder %s26, 1
      %p191 = por %p189, %p190
      %p192 = scmp.ne.s32.totalorder %s183, %s184
      %p193 = scmp.eq.s32.totalorder %s26, 0
      %p194 = por %p192, %p193
      %p195 = scmp.ne.s32.totalorder %s183, %s184
      %p196 = scmp.eq.s32.totalorder %s27, 1
      %p197 = por %p195, %p196
      %p199 = scmp.ne.s32.totalorder %s184, %s198
      %p200 = scmp.eq.s32.totalorder %s27, 0
      %p201 = por %p199, %p200
      %s203 = sadd.s32 %s202, 1
      %p206 = scmp.eq.s32.totalorder %s21, 1
      %p207 = scmp.ne.s32.totalorder %s202, %s204
      %p208 = scmp.eq.s32.totalorder %s21, 0
      %p209 = por %p207, %p208
      %p210 = scmp.ne.s32.totalorder %s202, %s204
      %p211 = scmp.eq.s32.totalorder %s26, 1
      %p212 = por %p210, %p211
      %p213 = scmp.ne.s32.totalorder %s204, %s205
      %p214 = scmp.eq.s32.totalorder %s26, 0
      %p215 = por %p213, %p214
      %p216 = scmp.ne.s32.totalorder %s204, %s205
      %p217 = scmp.eq.s32.totalorder %s27, 1
      %p218 = por %p216, %p217
      %p220 = scmp.ne.s32.totalorder %s205, %s219
      %p221 = scmp.eq.s32.totalorder %s27, 0
      %p222 = por %p220, %p221
      %s224 = sadd.s32 %s223, 1
      %p227 = scmp.eq.s32.totalorder %s21, 1
      %p228 = scmp.ne.s32.totalorder %s223, %s225
      %p229 = scmp.eq.s32.totalorder %s21, 0
      %p230 = por %p228, %p229
      %p231 = scmp.ne.s32.totalorder %s223, %s225
      %p232 = scmp.eq.s32.totalorder %s26, 1
      %p233 = por %p231, %p232
      %p234 = scmp.ne.s32.totalorder %s225, %s226
      %p235 = scmp.eq.s32.totalorder %s26, 0
      %p236 = por %p234, %p235
      %p237 = scmp.ne.s32.totalorder %s225, %s226
      %p238 = scmp.eq.s32.totalorder %s27, 1
      %p239 = por %p237, %p238
      %p241 = scmp.ne.s32.totalorder %s226, %s240
      %p242 = scmp.eq.s32.totalorder %s27, 0
      %p243 = por %p241, %p242
      %s245 = sadd.s32 %s244, 1
      %p248 = scmp.eq.s32.totalorder %s21, 1
      %p249 = scmp.ne.s32.totalorder %s244, %s246
      %p250 = scmp.eq.s32.totalorder %s21, 0
      %p251 = por %p249, %p250
      %p252 = scmp.ne.s32.totalorder %s244, %s246
      %p253 = scmp.eq.s32.totalorder %s26, 1
      %p254 = por %p252, %p253
      %p255 = scmp.ne.s32.totalorder %s246, %s247
      %p256 = scmp.eq.s32.totalorder %s26, 0
      %p257 = por %p255, %p256
      %p258 = scmp.ne.s32.totalorder %s246, %s247
      %p259 = scmp.eq.s32.totalorder %s27, 1
      %p260 = por %p258, %p259
      %p262 = scmp.ne.s32.totalorder %s247, %s261
      %p263 = scmp.eq.s32.totalorder %s27, 0
      %p264 = por %p262, %p263
      %s266 = sadd.s32 %s265, 1
      %p269 = scmp.eq.s32.totalorder %s21, 1
      %p270 = scmp.ne.s32.totalorder %s265, %s267
      %p271 = scmp.eq.s32.totalorder %s21, 0
      %p272 = por %p270, %p271
      %p273 = scmp.ne.s32.totalorder %s265, %s267
      %p274 = scmp.eq.s32.totalorder %s26, 1
      %p275 = por %p273, %p274
      %p276 = scmp.ne.s32.totalorder %s267, %s268
      %p277 = scmp.eq.s32.totalorder %s26, 0
      %p278 = por %p276, %p277
      %p279 = scmp.ne.s32.totalorder %s267, %s268
      %p280 = scmp.eq.s32.totalorder %s27, 1
      %p281 = por %p279, %p280
      %p283 = scmp.ne.s32.totalorder %s268, %s282
      %p284 = scmp.eq.s32.totalorder %s27, 0
      %p285 = por %p283, %p284
      %s286 = ssub.s32 %s21, %s28
      %p287 = scmp.eq.s32.totalorder %s286, 0
      %s289 = sadd.s32 %s288, 1
      %s290 = scalar_select %p287, %s288, %s289
      %p293 = pneg %p287
      %p294 = scmp.eq.s32.totalorder %s21, 1
      %p295 = por %p293, %p294
      %p296 = scmp.ne.s32.totalorder %s288, %s291
      %p297 = scmp.eq.s32.totalorder %s21, 0
      %p298 = por %p296, %p297
      %p299 = scmp.ne.s32.totalorder %s288, %s291
      %p300 = scmp.eq.s32.totalorder %s26, 1
      %p301 = por %p299, %p300
      %p302 = scmp.ne.s32.totalorder %s291, %s292
      %p303 = scmp.eq.s32.totalorder %s26, 0
      %p304 = por %p302, %p303
      %p305 = scmp.ne.s32.totalorder %s291, %s292
      %p306 = scmp.eq.s32.totalorder %s27, 1
      %p307 = por %p305, %p306
      %p309 = scmp.ne.s32.totalorder %s292, %s308
      %p310 = scmp.eq.s32.totalorder %s27, 0
      %p311 = por %p309, %p310
      %p312 = scmp.le.s32.totalorder 1, %s21
      %p313 = scmp.lt.s32.totalorder %s21, 3
      %p314 = pnand %p312, %p313
      %p315 = pneg %p314
      // Predicated region
      $region9: #{tpu_custom_call.1} parent=5 // pred_check
        _
      $region10: #{tpu_custom_call.1} parent=5 // pred_check_branch
        %317 = sbr.rel (%p314) target = $region12
      $region11: #{tpu_custom_call.1} parent=5 // pred_region
        %s318 = ssub.s32 %s21, 1
        // Predicated region
        $region13: #{tpu_custom_call.1} parent=11 // pred_check
          %p319 = pneg %p68
        $region14: #{tpu_custom_call.1} parent=11 // pred_check_branch
          %321 = sbr.rel (%p319) target = $region16
        $region15: #{tpu_custom_call.1} parent=11 // pred_region
          _
        $region16: #{tpu_custom_call.1} parent=11 // pred_fallthru
          _
        // Predicated region
        $region17: #{tpu_custom_call.1} parent=11 // pred_check
          %p322 = pneg %p89
        $region18: #{tpu_custom_call.1} parent=11 // pred_check_branch
          %324 = sbr.rel (%p322) target = $region20
        $region19: #{tpu_custom_call.1} parent=11 // pred_region
          _
        $region20: #{tpu_custom_call.1} parent=11 // pred_fallthru
          _
        // Predicated region
        $region21: #{tpu_custom_call.1} parent=11 // pred_check
          %p325 = pneg %p110
        $region22: #{tpu_custom_call.1} parent=11 // pred_check_branch
          %327 = sbr.rel (%p325) target = $region24
        $region23: #{tpu_custom_call.1} parent=11 // pred_region
          _
        $region24: #{tpu_custom_call.1} parent=11 // pred_fallthru
          _
        // Predicated region
        $region25: #{tpu_custom_call.1} parent=11 // pred_check
          %p328 = pneg %p131
        $region26: #{tpu_custom_call.1} parent=11 // pred_check_branch
          %330 = sbr.rel (%p328) target = $region28
        $region27: #{tpu_custom_call.1} parent=11 // pred_region
          _
        $region28: #{tpu_custom_call.1} parent=11 // pred_fallthru
          _
        // Predicated region
        $region29: #{tpu_custom_call.1} parent=11 // pred_check
          %p331 = pneg %p152
        $region30: #{tpu_custom_call.1} parent=11 // pred_check_branch
          %333 = sbr.rel (%p331) target = $region32
        $region31: #{tpu_custom_call.1} parent=11 // pred_region
          _
        $region32: #{tpu_custom_call.1} parent=11 // pred_fallthru
          _
        // Predicated region
        $region33: #{tpu_custom_call.1} parent=11 // pred_check
          %p334 = pneg %p173
        $region34: #{tpu_custom_call.1} parent=11 // pred_check_branch
          %336 = sbr.rel (%p334) target = $region36
        $region35: #{tpu_custom_call.1} parent=11 // pred_region
          _
        $region36: #{tpu_custom_call.1} parent=11 // pred_fallthru
          _
        // Predicated region
        $region37: #{tpu_custom_call.1} parent=11 // pred_check
          %p337 = pneg %p194
        $region38: #{tpu_custom_call.1} parent=11 // pred_check_branch
          %339 = sbr.rel (%p337) target = $region40
        $region39: #{tpu_custom_call.1} parent=11 // pred_region
          _
        $region40: #{tpu_custom_call.1} parent=11 // pred_fallthru
          _
        // Predicated region
        $region41: #{tpu_custom_call.1} parent=11 // pred_check
          %p340 = pneg %p215
        $region42: #{tpu_custom_call.1} parent=11 // pred_check_branch
          %342 = sbr.rel (%p340) target = $region44
        $region43: #{tpu_custom_call.1} parent=11 // pred_region
          _
        $region44: #{tpu_custom_call.1} parent=11 // pred_fallthru
          _
        // Predicated region
        $region45: #{tpu_custom_call.1} parent=11 // pred_check
          %p343 = pneg %p236
        $region46: #{tpu_custom_call.1} parent=11 // pred_check_branch
          %345 = sbr.rel (%p343) target = $region48
        $region47: #{tpu_custom_call.1} parent=11 // pred_region
          _
        $region48: #{tpu_custom_call.1} parent=11 // pred_fallthru
          _
        // Predicated region
        $region49: #{tpu_custom_call.1} parent=11 // pred_check
          %p346 = pneg %p257
        $region50: #{tpu_custom_call.1} parent=11 // pred_check_branch
          %348 = sbr.rel (%p346) target = $region52
        $region51: #{tpu_custom_call.1} parent=11 // pred_region
          _
        $region52: #{tpu_custom_call.1} parent=11 // pred_fallthru
          _
        // Predicated region
        $region53: #{tpu_custom_call.1} parent=11 // pred_check
          %p349 = pneg %p278
        $region54: #{tpu_custom_call.1} parent=11 // pred_check_branch
          %351 = sbr.rel (%p349) target = $region56
        $region55: #{tpu_custom_call.1} parent=11 // pred_region
          _
        $region56: #{tpu_custom_call.1} parent=11 // pred_fallthru
          _
      $region12: #{tpu_custom_call.1} parent=5 // pred_fallthru
        _
      %p352 = scmp.lt.s32.totalorder %s21, 2
      // Predicated region
      $region57: #{tpu_custom_call.1} parent=5 // pred_check
        %p353 = pneg %p352
      $region58: #{tpu_custom_call.1} parent=5 // pred_check_branch
        %355 = sbr.rel (%p353) target = $region60
      $region59: #{tpu_custom_call.1} parent=5 // pred_region
        // Predicated region
        $region61: #{tpu_custom_call.1} parent=59 // pred_check
          %p356 = pneg %p41
        $region62: #{tpu_custom_call.1} parent=59 // pred_check_branch
          %358 = sbr.rel (%p356) target = $region64
        $region63: #{tpu_custom_call.1} parent=59 // pred_region
          %p359 = scmp.lt.s32.totalorder %s21, 1
          %s360 = scalar_select %p359, %s21, 1
          %s361 = smul.addr %s360, 8
          %s362 = smul.addr %s361, 8
          %s363 = scalar_lea.vmem %s0, %s362
        $region64: #{tpu_custom_call.1} parent=59 // pred_fallthru
          _
      $region60: #{tpu_custom_call.1} parent=5 // pred_fallthru
        _
      %p364 = scmp.le.s32.totalorder 1, %s21
      %p365 = scmp.lt.s32.totalorder %s21, 3
      %p366 = pnand %p364, %p365
      %p367 = pneg %p366
      // Predicated region
      $region65: #{tpu_custom_call.1} parent=5 // pred_check
        _
      $region66: #{tpu_custom_call.1} parent=5 // pred_check_branch
        %369 = sbr.rel (%p366) target = $region68
      $region67: #{tpu_custom_call.1} parent=5 // pred_region
        %s370 = ssub.s32 %s21, 1
        %p371 = scmp.lt.s32.totalorder %s26, 1
        %s372 = scalar_select %p371, %s26, 1
        %s373 = smul.addr %s372, 8
        %s374 = smul.addr %s373, 8
        %s375 = scalar_lea.vmem %s0, %s374
        %p376 = pneg %p47
        %p377 = pneg %p44
        %p378 = pneg %p68
        %p379 = pneg %p65
        %p380 = pneg %p89
        %p381 = pneg %p86
        %p382 = pneg %p110
        %p383 = pneg %p107
        %p384 = pneg %p131
        %p385 = pneg %p128
        %p386 = pneg %p152
        %p387 = pneg %p149
        %p388 = pneg %p173
        %p389 = pneg %p170
        %p390 = pneg %p194
        %p391 = pneg %p191
        %p392 = pneg %p215
        %p393 = pneg %p212
        %p394 = pneg %p236
        %p395 = pneg %p233
        %p396 = pneg %p257
        %p397 = pneg %p254
        %p398 = pneg %p278
        %p399 = pneg %p275
        %p400 = pneg %p304
        %p401 = pneg %p301
        %s402 = sand.u32 %s291, 1
        %s403 = scalar_lea.sflag [#allocation3], %s402
        %s404 = sand.u32 %s291, 1
        %s405 = smul.addr %s404, 8
        %s406 = scalar_lea.vmem [#allocation2], %s405
        %p407 = scmp.lt.s32.totalorder %s26, 1
        %s408 = scalar_select %p407, %s26, 1
        %s409 = smul.addr %s408, 8
        %s410 = smul.addr %s409, 8
        %s411 = scalar_lea.vmem %s0, %s410
        %v412 = vld [vmem:[%s411] sm:$0xff]
        %v413 = vld [vmem:[%s411 + $0x8] sm:$0xff]
        %v414 = vld [vmem:[%s411 + $0x10] sm:$0xff]
        %v415 = vld [vmem:[%s411 + $0x18] sm:$0xff]
        %v416 = vld [vmem:[%s411 + $0x20] sm:$0xff]
        %v417 = vld [vmem:[%s411 + $0x28] sm:$0xff]
        %v418 = vld [vmem:[%s411 + $0x30] sm:$0xff]
        %v419 = vld [vmem:[%s411 + $0x38] sm:$0xff]
        %v420 = vld [vmem:[%s1] sm:$0xff]
        %v421 = vld [vmem:[%s1 + $0x8] sm:$0xff]
        %v422 = vld [vmem:[%s1 + $0x10] sm:$0xff]
        %v423 = vld [vmem:[%s1 + $0x18] sm:$0xff]
        %v424 = vld [vmem:[%s1 + $0x20] sm:$0xf]
        %vm425 = vcmask 293888
        %v427 = vsel %vm425, %v412, 0
        %v430 = vsel %vm425, %v413, 0
        %v433 = vsel %vm425, %v414, 0
        %v436 = vsel %vm425, %v415, 0
        %v439 = vsel %vm425, %v416, 0
        %v442 = vsel %vm425, %v417, 0
        %v445 = vsel %vm425, %v418, 0
        %v448 = vsel %vm425, %v419, 0
        %vm450 = vcmask 1043456
        %v452 = vsel %vm450, %v424, 0
        %454 = vmatprep.subr.mxu0 0.0
        %455 = vmatpush1.msra.mxu0 %v420
        %456 = vmatprep.subr.mxu0 0.0
        %457 = vmatpush1.msra.mxu0 %v421
        %458 = vmatprep.subr.mxu0 0.0
        %459 = vmatpush1.msra.mxu0 %v422
        %460 = vmatprep.subr.mxu0 0.0
        %461 = vmatpush1.msra.mxu0 %v423
        %462 = vmatprep.subr.mxu0 0.0
        %463 = vmatpush1.msra.mxu0 %v452
        %464 = vmatprep.subr.mxu0 0.0
        %465 = vmatpush1.msra.mxu0 0.0
        %466 = vmatprep.subr.mxu0 0.0
        %467 = vmatpush1.msra.mxu0 0.0
        %468 = vmatprep.subr.mxu0 0.0
        %469 = vmatpush1.msra.mxu0 0.0
        %470 = vmatprep.subr.mxu0 0.0
        %471 = vmatpush1.msra.mxu0 0.0
        %472 = vmatprep.subr.mxu0 0.0
        %473 = vmatpush1.msra.mxu0 0.0
        %474 = vmatprep.subr.mxu0 0.0
        %475 = vmatpush1.msra.mxu0 0.0
        %476 = vmatprep.subr.mxu0 0.0
        %477 = vmatpush1.msra.mxu0 0.0
        %478 = vmatprep.subr.mxu0 0.0
        %479 = vmatpush1.msra.mxu0 0.0
        %480 = vmatprep.subr.mxu0 0.0
        %481 = vmatpush1.msra.mxu0 0.0
        %482 = vmatprep.subr.mxu0 0.0
        %483 = vmatpush1.msra.mxu0 0.0
        %484 = vmatprep.subr.mxu0 0.0
        %485 = vmatpush1.msra.mxu0 0.0
        %486 = vmatprep.subr.mxu0 0.0
        %487 = vmatpush1.msra.mxu0 0.0
        %488 = vmatprep.subr.mxu0 0.0
        %489 = vmatpush1.msra.mxu0 0.0
        %490 = vmatprep.subr.mxu0 0.0
        %491 = vmatpush1.msra.mxu0 0.0
        %492 = vmatprep.subr.mxu0 0.0
        %493 = vmatpush1.msra.mxu0 0.0
        %494 = vmatprep.subr.mxu0 0.0
        %495 = vmatpush1.msra.mxu0 0.0
        %496 = vmatprep.subr.mxu0 0.0
        %497 = vmatpush1.msra.mxu0 0.0
        %498 = vmatprep.subr.mxu0 0.0
        %499 = vmatpush1.msra.mxu0 0.0
        %500 = vmatprep.subr.mxu0 0.0
        %501 = vmatpush1.msra.mxu0 0.0
        %502 = vmatprep.subr.mxu0 0.0
        %503 = vmatpush1.msra.mxu0 0.0
        %504 = vmatprep.subr.mxu0 0.0
        %505 = vmatpush1.msra.mxu0 0.0
        %506 = vmatprep.subr.mxu0 0.0
        %507 = vmatpush1.msra.mxu0 0.0
        %508 = vmatprep.subr.mxu0 0.0
        %509 = vmatpush1.msra.mxu0 0.0
        %510 = vmatprep.subr.mxu0 0.0
        %511 = vmatpush1.msra.mxu0 0.0
        %512 = vmatprep.subr.mxu0 0.0
        %513 = vmatpush1.msra.mxu0 0.0
        %514 = vmatprep.subr.mxu0 0.0
        %515 = vmatpush1.msra.mxu0 0.0
        %516 = vmatprep.subr.mxu0 0.0
        %517 = vmatpush1.msra.mxu0 0.0
        %518 = vmatprep.mubr.f32.mxu0 0.0
        %519 = vmatmul.mubr.f32.gmra.mrb[0].mxu0 %v427
        %v520 = vpop.f32.mrb[0].mxu0
        %v521 = vadd.f32 0.0, %v520
        %v522 = vpop.f32.mrb[0].mxu0
        %523 = vmatprep.mubr.f32.mxu0 0.0
        %524 = vmatmul.mubr.f32.gmra.mrb[0].mxu0 %v430
        %v525 = vpop.f32.mrb[0].mxu0
        %v526 = vadd.f32 0.0, %v525
        %v527 = vpop.f32.mrb[0].mxu0
        %528 = vmatprep.mubr.f32.mxu0 0.0
        %529 = vmatmul.mubr.f32.gmra.mrb[0].mxu0 %v433
        %v530 = vpop.f32.mrb[0].mxu0
        %v531 = vadd.f32 0.0, %v530
        %v532 = vpop.f32.mrb[0].mxu0
        %533 = vmatprep.mubr.f32.mxu0 0.0
        %534 = vmatmul.mubr.f32.gmra.mrb[0].mxu0 %v436
        %v535 = vpop.f32.mrb[0].mxu0
        %v536 = vadd.f32 0.0, %v535
        %v537 = vpop.f32.mrb[0].mxu0
        %538 = vmatprep.mubr.f32.mxu0 0.0
        %539 = vmatmul.mubr.f32.gmra.mrb[0].mxu0 %v439
        %v540 = vpop.f32.mrb[0].mxu0
        %v541 = vadd.f32 0.0, %v540
        %v542 = vpop.f32.mrb[0].mxu0
        %543 = vmatprep.mubr.f32.mxu0 0.0
        %544 = vmatmul.mubr.f32.gmra.mrb[0].mxu0 %v442
        %v545 = vpop.f32.mrb[0].mxu0
        %v546 = vadd.f32 0.0, %v545
        %v547 = vpop.f32.mrb[0].mxu0
        %548 = vmatprep.mubr.f32.mxu0 0.0
        %549 = vmatmul.mubr.f32.gmra.mrb[0].mxu0 %v445
        %v550 = vpop.f32.mrb[0].mxu0
        %v551 = vadd.f32 0.0, %v550
        %v552 = vpop.f32.mrb[0].mxu0
        %553 = vmatprep.mubr.f32.mxu0 0.0
        %554 = vmatmul.mubr.f32.gmra.mrb[0].mxu0 %v448
        %v555 = vpop.f32.mrb[0].mxu0
        %v556 = vadd.f32 0.0, %v555
        %v557 = vpop.f32.mrb[0].mxu0
        %558 = vdwg.mxu0
        %v559 = vld [vmem:[%s2] sm:$0x1]
        %v561 = vlaneseq
        %v562 = vshrl.u32 %v561, 7
        %v563 = vsub.s32 0, %v562
        %v564 = vrot.slane %v559, %v563
        %v566 = vmul.f32 %v521, %v564
        %v567 = vmul.f32 %v526, %v564
        %v568 = vmul.f32 %v531, %v564
        %v569 = vmul.f32 %v536, %v564
        %v570 = vmul.f32 %v541, %v564
        %v571 = vmul.f32 %v546, %v564
        %v572 = vmul.f32 %v551, %v564
        %v573 = vmul.f32 %v556, %v564
        %v574 = vld [vmem:[%s3] sm:$0x1]
        %v576 = vlaneseq
        %v577 = vshrl.u32 %v576, 7
        %v578 = vsub.s32 0, %v577
        %v579 = vrot.slane %v574, %v578
        %v581 = vadd.f32 %v566, %v579
        %v582 = vadd.f32 %v567, %v579
        %v583 = vadd.f32 %v568, %v579
        %v584 = vadd.f32 %v569, %v579
        %v585 = vadd.f32 %v570, %v579
        %v586 = vadd.f32 %v571, %v579
        %v587 = vadd.f32 %v572, %v579
        %v588 = vadd.f32 %v573, %v579
        %v589 = vmax.f32 %v581, 0.0
        %v590 = vmax.f32 %v582, 0.0
        %v591 = vmax.f32 %v583, 0.0
        %v592 = vmax.f32 %v584, 0.0
        %v593 = vmax.f32 %v585, 0.0
        %v594 = vmax.f32 %v586, 0.0
        %v595 = vmax.f32 %v587, 0.0
        %v596 = vmax.f32 %v588, 0.0
        %v597 = vld [vmem:[%s5] sm:$0xff]
        %v598 = vld [vmem:[%s5 + $0x8] sm:$0xff]
        %v599 = vld [vmem:[%s5 + $0x10] sm:$0xff]
        %v600 = vld [vmem:[%s5 + $0x18] sm:$0xff]
        %vm601 = vcmask 261120
        %v603 = vsel %vm601, %v589, 0
        %v606 = vsel %vm601, %v590, 0
        %v609 = vsel %vm601, %v591, 0
        %v612 = vsel %vm601, %v592, 0
        %v615 = vsel %vm601, %v593, 0
        %v618 = vsel %vm601, %v594, 0
        %v621 = vsel %vm601, %v595, 0
        %v624 = vsel %vm601, %v596, 0
        %626 = vmatprep.subr.mxu0 0.0
        %627 = vmatpush1.msra.mxu0 %v597
        %628 = vmatprep.subr.mxu0 0.0
        %629 = vmatpush1.msra.mxu0 %v598
        %630 = vmatprep.subr.mxu0 0.0
        %631 = vmatpush1.msra.mxu0 %v599
        %632 = vmatprep.subr.mxu0 0.0
        %633 = vmatpush1.msra.mxu0 %v600
        %634 = vmatprep.subr.mxu0 0.0
        %635 = vmatpush1.msra.mxu0 0.0
        %636 = vmatprep.subr.mxu0 0.0
        %637 = vmatpush1.msra.mxu0 0.0
        %638 = vmatprep.subr.mxu0 0.0
        %639 = vmatpush1.msra.mxu0 0.0
        %640 = vmatprep.subr.mxu0 0.0
        %641 = vmatpush1.msra.mxu0 0.0
        %642 = vmatprep.subr.mxu0 0.0
        %643 = vmatpush1.msra.mxu0 0.0
        %644 = vmatprep.subr.mxu0 0.0
        %645 = vmatpush1.msra.mxu0 0.0
        %646 = vmatprep.subr.mxu0 0.0
        %647 = vmatpush1.msra.mxu0 0.0
        %648 = vmatprep.subr.mxu0 0.0
        %649 = vmatpush1.msra.mxu0 0.0
        %650 = vmatprep.subr.mxu0 0.0
        %651 = vmatpush1.msra.mxu0 0.0
        %652 = vmatprep.subr.mxu0 0.0
        %653 = vmatpush1.msra.mxu0 0.0
        %654 = vmatprep.subr.mxu0 0.0
        %655 = vmatpush1.msra.mxu0 0.0
        %656 = vmatprep.subr.mxu0 0.0
        %657 = vmatpush1.msra.mxu0 0.0
        %658 = vmatprep.subr.mxu0 0.0
        %659 = vmatpush1.msra.mxu0 0.0
        %660 = vmatprep.subr.mxu0 0.0
        %661 = vmatpush1.msra.mxu0 0.0
        %662 = vmatprep.subr.mxu0 0.0
        %663 = vmatpush1.msra.mxu0 0.0
        %664 = vmatprep.subr.mxu0 0.0
        %665 = vmatpush1.msra.mxu0 0.0
        %666 = vmatprep.subr.mxu0 0.0
        %667 = vmatpush1.msra.mxu0 0.0
        %668 = vmatprep.subr.mxu0 0.0
        %669 = vmatpush1.msra.mxu0 0.0
        %670 = vmatprep.subr.mxu0 0.0
        %671 = vmatpush1.msra.mxu0 0.0
        %672 = vmatprep.subr.mxu0 0.0
        %673 = vmatpush1.msra.mxu0 0.0
        %674 = vmatprep.subr.mxu0 0.0
        %675 = vmatpush1.msra.mxu0 0.0
        %676 = vmatprep.subr.mxu0 0.0
        %677 = vmatpush1.msra.mxu0 0.0
        %678 = vmatprep.subr.mxu0 0.0
        %679 = vmatpush1.msra.mxu0 0.0
        %680 = vmatprep.subr.mxu0 0.0
        %681 = vmatpush1.msra.mxu0 0.0
        %682 = vmatprep.subr.mxu0 0.0
        %683 = vmatpush1.msra.mxu0 0.0
        %684 = vmatprep.subr.mxu0 0.0
        %685 = vmatpush1.msra.mxu0 0.0
        %686 = vmatprep.subr.mxu0 0.0
        %687 = vmatpush1.msra.mxu0 0.0
        %688 = vmatprep.subr.mxu0 0.0
        %689 = vmatpush1.msra.mxu0 0.0
        %690 = vmatprep.mubr.f32.mxu0 0.0
        %691 = vmatmul.mubr.f32.gmra.mrb[0].mxu0 %v603
        %v692 = vpop.f32.mrb[0].mxu0
        %v693 = vadd.f32 0.0, %v692
        %v694 = vpop.f32.mrb[0].mxu0
        %695 = vmatprep.mubr.f32.mxu0 0.0
        %696 = vmatmul.mubr.f32.gmra.mrb[0].mxu0 %v606
        %v697 = vpop.f32.mrb[0].mxu0
        %v698 = vadd.f32 0.0, %v697
        %v699 = vpop.f32.mrb[0].mxu0
        %700 = vmatprep.mubr.f32.mxu0 0.0
        %701 = vmatmul.mubr.f32.gmra.mrb[0].mxu0 %v609
        %v702 = vpop.f32.mrb[0].mxu0
        %v703 = vadd.f32 0.0, %v702
        %v704 = vpop.f32.mrb[0].mxu0
        %705 = vmatprep.mubr.f32.mxu0 0.0
        %706 = vmatmul.mubr.f32.gmra.mrb[0].mxu0 %v612
        %v707 = vpop.f32.mrb[0].mxu0
        %v708 = vadd.f32 0.0, %v707
        %v709 = vpop.f32.mrb[0].mxu0
        %710 = vmatprep.mubr.f32.mxu0 0.0
        %711 = vmatmul.mubr.f32.gmra.mrb[0].mxu0 %v615
        %v712 = vpop.f32.mrb[0].mxu0
        %v713 = vadd.f32 0.0, %v712
        %v714 = vpop.f32.mrb[0].mxu0
        %715 = vmatprep.mubr.f32.mxu0 0.0
        %716 = vmatmul.mubr.f32.gmra.mrb[0].mxu0 %v618
        %v717 = vpop.f32.mrb[0].mxu0
        %v718 = vadd.f32 0.0, %v717
        %v719 = vpop.f32.mrb[0].mxu0
        %720 = vmatprep.mubr.f32.mxu0 0.0
        %721 = vmatmul.mubr.f32.gmra.mrb[0].mxu0 %v621
        %v722 = vpop.f32.mrb[0].mxu0
        %v723 = vadd.f32 0.0, %v722
        %v724 = vpop.f32.mrb[0].mxu0
        %725 = vmatprep.mubr.f32.mxu0 0.0
        %726 = vmatmul.mubr.f32.gmra.mrb[0].mxu0 %v624
        %v727 = vpop.f32.mrb[0].mxu0
        %v728 = vadd.f32 0.0, %v727
        %v729 = vpop.f32.mrb[0].mxu0
        %730 = vdwg.mxu0
        %v731 = vld [vmem:[%s4] sm:$0xff]
        %vm732 = vcmask 523264
        %v734 = vsel %vm732, %v731, 0
        %736 = vmatprep.subr.mxu0 0.0
        %737 = vmatpush1.msra.mxu0 %v693
        %738 = vmatprep.subr.mxu0 0.0
        %739 = vmatpush1.msra.mxu0 %v698
        %740 = vmatprep.subr.mxu0 0.0
        %741 = vmatpush1.msra.mxu0 %v703
        %742 = vmatprep.subr.mxu0 0.0
        %743 = vmatpush1.msra.mxu0 %v708
        %744 = vmatprep.subr.mxu0 0.0
        %745 = vmatpush1.msra.mxu0 %v713
        %746 = vmatprep.subr.mxu0 0.0
        %747 = vmatpush1.msra.mxu0 %v718
        %748 = vmatprep.subr.mxu0 0.0
        %749 = vmatpush1.msra.mxu0 %v723
        %750 = vmatprep.subr.mxu0 0.0
        %751 = vmatpush1.msra.mxu0 %v728
        %752 = vmatprep.subr.mxu0 0.0
        %753 = vmatpush1.msra.mxu0 0.0
        %754 = vmatprep.subr.mxu0 0.0
        %755 = vmatpush1.msra.mxu0 0.0
        %756 = vmatprep.subr.mxu0 0.0
        %757 = vmatpush1.msra.mxu0 0.0
        %758 = vmatprep.subr.mxu0 0.0
        %759 = vmatpush1.msra.mxu0 0.0
        %760 = vmatprep.subr.mxu0 0.0
        %761 = vmatpush1.msra.mxu0 0.0
        %762 = vmatprep.subr.mxu0 0.0
        %763 = vmatpush1.msra.mxu0 0.0
        %764 = vmatprep.subr.mxu0 0.0
        %765 = vmatpush1.msra.mxu0 0.0
        %766 = vmatprep.subr.mxu0 0.0
        %767 = vmatpush1.msra.mxu0 0.0
        %768 = vmatprep.subr.mxu0 0.0
        %769 = vmatpush1.msra.mxu0 0.0
        %770 = vmatprep.subr.mxu0 0.0
        %771 = vmatpush1.msra.mxu0 0.0
        %772 = vmatprep.subr.mxu0 0.0
        %773 = vmatpush1.msra.mxu0 0.0
        %774 = vmatprep.subr.mxu0 0.0
        %775 = vmatpush1.msra.mxu0 0.0
        %776 = vmatprep.subr.mxu0 0.0
        %777 = vmatpush1.msra.mxu0 0.0
        %778 = vmatprep.subr.mxu0 0.0
        %779 = vmatpush1.msra.mxu0 0.0
        %780 = vmatprep.subr.mxu0 0.0
        %781 = vmatpush1.msra.mxu0 0.0
        %782 = vmatprep.subr.mxu0 0.0
        %783 = vmatpush1.msra.mxu0 0.0
        %784 = vmatprep.subr.mxu0 0.0
        %785 = vmatpush1.msra.mxu0 0.0
        %786 = vmatprep.subr.mxu0 0.0
        %787 = vmatpush1.msra.mxu0 0.0
        %788 = vmatprep.subr.mxu0 0.0
        %789 = vmatpush1.msra.mxu0 0.0
        %790 = vmatprep.subr.mxu0 0.0
        %791 = vmatpush1.msra.mxu0 0.0
        %792 = vmatprep.subr.mxu0 0.0
        %793 = vmatpush1.msra.mxu0 0.0
        %794 = vmatprep.subr.mxu0 0.0
        %795 = vmatpush1.msra.mxu0 0.0
        %796 = vmatprep.subr.mxu0 0.0
        %797 = vmatpush1.msra.mxu0 0.0
        %798 = vmatprep.subr.mxu0 0.0
        %799 = vmatpush1.msra.mxu0 0.0
        %800 = vmatprep.mubr.f32.mxu0 0.0
        %801 = vmatmul.mubr.f32.gmra.mrb[0].mxu0 %v734
        %v802 = vpop.f32.mrb[0].mxu0
        %v803 = vadd.f32 0.0, %v802
        %v804 = vpop.f32.mrb[0].mxu0
        %805 = vdwg.mxu0
        %806 = vxpose.xlu0.b32.start [1/16] %v803, 128
        %807 = vxpose.xlu0.b32.cont [2/16] 0.0, 128
        %808 = vxpose.xlu0.b32.cont [3/16] 0.0, 128
        %809 = vxpose.xlu0.b32.cont [4/16] 0.0, 128
        %810 = vxpose.xlu0.b32.cont [5/16] 0.0, 128
        %811 = vxpose.xlu0.b32.cont [6/16] 0.0, 128
        %812 = vxpose.xlu0.b32.cont [7/16] 0.0, 128
        %813 = vxpose.xlu0.b32.cont [8/16] 0.0, 128
        %814 = vxpose.xlu0.b32.cont [9/16] 0.0, 128
        %815 = vxpose.xlu0.b32.cont [10/16] 0.0, 128
        %816 = vxpose.xlu0.b32.cont [11/16] 0.0, 128
        %817 = vxpose.xlu0.b32.cont [12/16] 0.0, 128
        %818 = vxpose.xlu0.b32.cont [13/16] 0.0, 128
        %819 = vxpose.xlu0.b32.cont [14/16] 0.0, 128
        %820 = vxpose.xlu0.b32.cont [15/16] 0.0, 128
        %821 = vxpose.xlu0.b32.end [16/16] 0.0, 128
        %v822 = vpop.trf.xlu0
        %v823 = vpop.trf.xlu0
        %v824 = vpop.trf.xlu0
        %v825 = vpop.trf.xlu0
        %v826 = vpop.trf.xlu0
        %v827 = vpop.trf.xlu0
        %v828 = vpop.trf.xlu0
        %v829 = vpop.trf.xlu0
        %v830 = vpop.trf.xlu0
        %v831 = vpop.trf.xlu0
        %v832 = vpop.trf.xlu0
        %v833 = vpop.trf.xlu0
        %v834 = vpop.trf.xlu0
        %v835 = vpop.trf.xlu0
        %v836 = vpop.trf.xlu0
        %v837 = vpop.trf.xlu0
        %v838 = vld [vmem:[%s6] sm:$0xff]
        %v839 = vadd.f32 %v822, %v838
        %vm840 = vcmask 64512
        %v841 = vsel %vm840, %v839, -inf
        %842 = vmax.xlane.f32.xlu0 %v841
        %v843 = vpop.xlane.xlu0 %842
        %v844 = vsub.f32 %v839, %v843
        %v845 = vmul.f32 %v844, 1.442695
        %v846 = vpow.pop %v845
        %v847 = vsel %vm840, %v846, 0.0
        %848 = vadd.xlane.f32.xlu0 %v847
        %v849 = vpop.xlane.xlu0 %848
        %v850 = vrcp.pop %v849
        %v851 = vmul.f32 %v846, %v850
        %v852 = vld [vmem:[%s7] sm:$0xff]
        %v854 = vsel %vm840, %v851, 0
        %856 = vmatprep.subr.mxu0 0.0
        %857 = vmatpush1.msra.mxu0 %v852
        %858 = vmatprep.subr.mxu0 0.0
        %859 = vmatpush1.msra.mxu0 0.0
        %860 = vmatprep.subr.mxu0 0.0
        %861 = vmatpush1.msra.mxu0 0.0
        %862 = vmatprep.subr.mxu0 0.0
        %863 = vmatpush1.msra.mxu0 0.0
        %864 = vmatprep.subr.mxu0 0.0
        %865 = vmatpush1.msra.mxu0 0.0
        %866 = vmatprep.subr.mxu0 0.0
        %867 = vmatpush1.msra.mxu0 0.0
        %868 = vmatprep.subr.mxu0 0.0
        %869 = vmatpush1.msra.mxu0 0.0
        %870 = vmatprep.subr.mxu0 0.0
        %871 = vmatpush1.msra.mxu0 0.0
        %872 = vmatprep.subr.mxu0 0.0
        %873 = vmatpush1.msra.mxu0 0.0
        %874 = vmatprep.subr.mxu0 0.0
        %875 = vmatpush1.msra.mxu0 0.0
        %876 = vmatprep.subr.mxu0 0.0
        %877 = vmatpush1.msra.mxu0 0.0
        %878 = vmatprep.subr.mxu0 0.0
        %879 = vmatpush1.msra.mxu0 0.0
        %880 = vmatprep.subr.mxu0 0.0
        %881 = vmatpush1.msra.mxu0 0.0
        %882 = vmatprep.subr.mxu0 0.0
        %883 = vmatpush1.msra.mxu0 0.0
        %884 = vmatprep.subr.mxu0 0.0
        %885 = vmatpush1.msra.mxu0 0.0
        %886 = vmatprep.subr.mxu0 0.0
        %887 = vmatpush1.msra.mxu0 0.0
        %888 = vmatprep.subr.mxu0 0.0
        %889 = vmatpush1.msra.mxu0 0.0
        %890 = vmatprep.subr.mxu0 0.0
        %891 = vmatpush1.msra.mxu0 0.0
        %892 = vmatprep.subr.mxu0 0.0
        %893 = vmatpush1.msra.mxu0 0.0
        %894 = vmatprep.subr.mxu0 0.0
        %895 = vmatpush1.msra.mxu0 0.0
        %896 = vmatprep.subr.mxu0 0.0
        %897 = vmatpush1.msra.mxu0 0.0
        %898 = vmatprep.subr.mxu0 0.0
        %899 = vmatpush1.msra.mxu0 0.0
        %900 = vmatprep.subr.mxu0 0.0
        %901 = vmatpush1.msra.mxu0 0.0
        %902 = vmatprep.subr.mxu0 0.0
        %903 = vmatpush1.msra.mxu0 0.0
        %904 = vmatprep.subr.mxu0 0.0
        %905 = vmatpush1.msra.mxu0 0.0
        %906 = vmatprep.subr.mxu0 0.0
        %907 = vmatpush1.msra.mxu0 0.0
        %908 = vmatprep.subr.mxu0 0.0
        %909 = vmatpush1.msra.mxu0 0.0
        %910 = vmatprep.subr.mxu0 0.0
        %911 = vmatpush1.msra.mxu0 0.0
        %912 = vmatprep.subr.mxu0 0.0
        %913 = vmatpush1.msra.mxu0 0.0
        %914 = vmatprep.subr.mxu0 0.0
        %915 = vmatpush1.msra.mxu0 0.0
        %916 = vmatprep.subr.mxu0 0.0
        %917 = vmatpush1.msra.mxu0 0.0
        %918 = vmatprep.subr.mxu0 0.0
        %919 = vmatpush1.msra.mxu0 0.0
        %920 = vmatprep.mubr.f32.mxu0 0.0
        %921 = vmatmul.mubr.f32.gmra.mrb[0].mxu0 %v854
        %v922 = vpop.f32.mrb[0].mxu0
        %v923 = vadd.f32 0.0, %v922
        %v924 = vpop.f32.mrb[0].mxu0
        %925 = vdwg.mxu0
        %v926 = vld [vmem:[%s9] sm:$0xff]
        %v927 = vld [vmem:[%s9 + $0x8] sm:$0xff]
        %v928 = vld [vmem:[%s9 + $0x10] sm:$0xff]
        %v929 = vld [vmem:[%s9 + $0x18] sm:$0xff]
        %v931 = vsel %vm601, %v923, 0
        %933 = vmatprep.subr.mxu0 0.0
        %934 = vmatpush1.msra.mxu0 %v926
        %935 = vmatprep.subr.mxu0 0.0
        %936 = vmatpush1.msra.mxu0 %v927
        %937 = vmatprep.subr.mxu0 0.0
        %938 = vmatpush1.msra.mxu0 %v928
        %939 = vmatprep.subr.mxu0 0.0
        %940 = vmatpush1.msra.mxu0 %v929
        %941 = vmatprep.subr.mxu0 0.0
        %942 = vmatpush1.msra.mxu0 0.0
        %943 = vmatprep.subr.mxu0 0.0
        %944 = vmatpush1.msra.mxu0 0.0
        %945 = vmatprep.subr.mxu0 0.0
        %946 = vmatpush1.msra.mxu0 0.0
        %947 = vmatprep.subr.mxu0 0.0
        %948 = vmatpush1.msra.mxu0 0.0
        %949 = vmatprep.subr.mxu0 0.0
        %950 = vmatpush1.msra.mxu0 0.0
        %951 = vmatprep.subr.mxu0 0.0
        %952 = vmatpush1.msra.mxu0 0.0
        %953 = vmatprep.subr.mxu0 0.0
        %954 = vmatpush1.msra.mxu0 0.0
        %955 = vmatprep.subr.mxu0 0.0
        %956 = vmatpush1.msra.mxu0 0.0
        %957 = vmatprep.subr.mxu0 0.0
        %958 = vmatpush1.msra.mxu0 0.0
        %959 = vmatprep.subr.mxu0 0.0
        %960 = vmatpush1.msra.mxu0 0.0
        %961 = vmatprep.subr.mxu0 0.0
        %962 = vmatpush1.msra.mxu0 0.0
        %963 = vmatprep.subr.mxu0 0.0
        %964 = vmatpush1.msra.mxu0 0.0
        %965 = vmatprep.subr.mxu0 0.0
        %966 = vmatpush1.msra.mxu0 0.0
        %967 = vmatprep.subr.mxu0 0.0
        %968 = vmatpush1.msra.mxu0 0.0
        %969 = vmatprep.subr.mxu0 0.0
        %970 = vmatpush1.msra.mxu0 0.0
        %971 = vmatprep.subr.mxu0 0.0
        %972 = vmatpush1.msra.mxu0 0.0
        %973 = vmatprep.subr.mxu0 0.0
        %974 = vmatpush1.msra.mxu0 0.0
        %975 = vmatprep.subr.mxu0 0.0
        %976 = vmatpush1.msra.mxu0 0.0
        %977 = vmatprep.subr.mxu0 0.0
        %978 = vmatpush1.msra.mxu0 0.0
        %979 = vmatprep.subr.mxu0 0.0
        %980 = vmatpush1.msra.mxu0 0.0
        %981 = vmatprep.subr.mxu0 0.0
        %982 = vmatpush1.msra.mxu0 0.0
        %983 = vmatprep.subr.mxu0 0.0
        %984 = vmatpush1.msra.mxu0 0.0
        %985 = vmatprep.subr.mxu0 0.0
        %986 = vmatpush1.msra.mxu0 0.0
        %987 = vmatprep.subr.mxu0 0.0
        %988 = vmatpush1.msra.mxu0 0.0
        %989 = vmatprep.subr.mxu0 0.0
        %990 = vmatpush1.msra.mxu0 0.0
        %991 = vmatprep.subr.mxu0 0.0
        %992 = vmatpush1.msra.mxu0 0.0
        %993 = vmatprep.subr.mxu0 0.0
        %994 = vmatpush1.msra.mxu0 0.0
        %995 = vmatprep.subr.mxu0 0.0
        %996 = vmatpush1.msra.mxu0 0.0
        %997 = vmatprep.mubr.f32.mxu0 0.0
        %998 = vmatmul.mubr.f32.gmra.mrb[0].mxu0 %v931
        %v999 = vpop.f32.mrb[0].mxu0
        %v1000 = vadd.f32 0.0, %v999
        %v1001 = vpop.f32.mrb[0].mxu0
        %1002 = vdwg.mxu0
        %v1003 = vld [vmem:[%s10] sm:$0x1]
        %v1005 = vlaneseq
        %v1006 = vshrl.u32 %v1005, 7
        %v1007 = vsub.s32 0, %v1006
        %v1008 = vrot.slane %v1003, %v1007
        %v1010 = vmul.f32 %v1000, %v1008
        %v1011 = vld [vmem:[%s11] sm:$0x1]
        %v1013 = vlaneseq
        %v1014 = vshrl.u32 %v1013, 7
        %v1015 = vsub.s32 0, %v1014
        %v1016 = vrot.slane %v1011, %v1015
        %v1018 = vadd.f32 %v1010, %v1016
        %v1019 = vmax.f32 %v1018, 0.0
        %v1020 = vld [vmem:[%s8] sm:$0xff]
        %v1021 = vadd.f32 %v1019, %v1020
        %1022 = vst.msk [vmem:[%s406] sm:$0xff] %vm732, %v1021
        %s1023 = sand.u32 %s291, 1
        %s1024 = scalar_lea.sflag [#allocation3], %s1023
        %s1025 = sand.u32 %s291, 1
        %s1026 = smul.addr %s1025, 8
        %s1027 = scalar_lea.vmem [#allocation2], %s1026
        // Predicated region
        $region69: #{tpu_custom_call.1} parent=67 // pred_check
          %p1028 = pneg %p301
        $region70: #{tpu_custom_call.1} parent=67 // pred_check_branch
          %1030 = sbr.rel (%p1028) target = $region72
        $region71: #{tpu_custom_call.1} parent=67 // pred_region
          %s1032 = ssub.s32 128, 128
          %1033 = vsyncadd %s1024, %s1032
          %s1034 = smul.addr %s26, 128
          %s1035 = scalar_lea.hbm %s12, %s1034
          %s1037 = sshll.u32 %s1027, 4
          %s1038 = int_to_ptr.vmem [resolvable:$true] %s1037
          %1040 = dma.vmem_to_hbm [thread:$0]  %s1038, 128, %s1035, %s1024
        $region72: #{tpu_custom_call.1} parent=67 // pred_fallthru
          _
      $region68: #{tpu_custom_call.1} parent=5 // pred_fallthru
        _
      %p1041 = scmp.le.s32.totalorder 2, %s21
      // Predicated region
      $region73: #{tpu_custom_call.1} parent=5 // pred_check
        %p1042 = pneg %p1041
      $region74: #{tpu_custom_call.1} parent=5 // pred_check_branch
        %1044 = sbr.rel (%p1042) target = $region76
      $region75: #{tpu_custom_call.1} parent=5 // pred_region
        %s1045 = ssub.s32 %s21, 2
        // Predicated region
        $region77: #{tpu_custom_call.1} parent=75 // pred_check
          %p1046 = pneg %p307
        $region78: #{tpu_custom_call.1} parent=75 // pred_check_branch
          %1048 = sbr.rel (%p1046) target = $region80
        $region79: #{tpu_custom_call.1} parent=75 // pred_region
          %s1049 = sand.u32 %s292, 1
          %s1050 = scalar_lea.sflag [#allocation3], %s1049
          %s1051 = sand.u32 %s292, 1
          %s1052 = smul.addr %s1051, 8
          %s1053 = scalar_lea.vmem [#allocation2], %s1052
          %1054 = dma.done %s1050, 128
        $region80: #{tpu_custom_call.1} parent=75 // pred_fallthru
          _
      $region76: #{tpu_custom_call.1} parent=5 // pred_fallthru
        _
    $region6: #{tpu_custom_call.1} parent=1 // loop_footer
      %s25 = sadd.s32 1, %s21
    $region7: #{tpu_custom_call.1} parent=1 // loop_footer_branch
      %20 = sbr.rel target = $region3
    $region8: #{tpu_custom_call.1} parent=1 // loop_exit
      _
    %1055 = vsyncpa [#allocation3], 1
    %s1056 = scalar_lea.sflag [#allocation3], 1
    %1057 = vsyncpa %s1056, 1

</llo_original>
